<compile_context>
chip_gen: v7x
topology: tpu7x:2x2x1
jax: 0.10.0
libtpu: 0.0.40
codegen_flags: <defaults>
</compile_context>

<pallas_src>
import functools
import math

import jax
import jax.numpy as jnp
from jax import lax
from jax.experimental import pallas as pl
from jax.experimental.pallas import tpu as pltpu


# ---------------------------------------------------------------------------
# pltpu.roll convention probe (documented to match jnp.roll; verify once so the
# shift direction used by the depthwise taps is robust).
# ---------------------------------------------------------------------------
@functools.lru_cache(maxsize=None)
def _roll_matches_jnp():
    def kernel(x_ref, o_ref):
        o_ref[...] = pltpu.roll(x_ref[...], 1, axis=0)

    x = jnp.arange(8 * 128, dtype=jnp.float32).reshape(8, 128)
    y = pl.pallas_call(
        kernel, out_shape=jax.ShapeDtypeStruct((8, 128), jnp.float32))(x)
    return bool(jnp.array_equal(y, jnp.roll(x, 1, axis=0)))


# ---------------------------------------------------------------------------
# Shared in-kernel depthwise-conv helper (flattened spatial on sublanes,
# channels on lanes).
# ---------------------------------------------------------------------------
def _dw_taps(x, w, H, W, roll_like_jnp):
    """Depthwise KxK conv, stride 1, zero 'same' padding.

    x: (H*W, C)  spatial row-major on the sublane axis, channels on lanes.
    w: (K, K, C) per-channel taps.
    Returns (H*W, C) float32.

    Each tap = one sublane roll of the tile (XLU slot) + one masked
    multiply-add (VPU); the +-K//2 halo never exists in HBM or VMEM.
    """
    L, C = x.shape
    K = w.shape[0]
    P = K // 2
    w = w.astype(x.dtype)

    pos = lax.broadcasted_iota(jnp.int32, (L, 1), 0)
    row = pos // W
    col = pos - row * W
    # Hoisted border masks (do not rebuild broadcasts inside the tap loop).
    row_ok = [jnp.logical_and(row + dh >= 0, row + dh < H)
              for dh in range(-P, P + 1)]
    col_ok = [jnp.logical_and(col + dw >= 0, col + dw < W)
              for dw in range(-P, P + 1)]

    acc = jnp.zeros((L, C), jnp.float32)
    for dh in range(-P, P + 1):
        for dw in range(-P, P + 1):
            s = dh * W + dw                       # flattened spatial shift
            shift = (-s if roll_like_jnp else s) % L
            shifted = x if shift == 0 else pltpu.roll(x, shift, axis=0)
            m = jnp.logical_and(row_ok[dh + P], col_ok[dw + P])
            tap = jnp.where(m, shifted, 0.0)
            acc = acc + (tap * w[dh + P, dw + P][None, :]).astype(jnp.float32)
    return acc


# ---------------------------------------------------------------------------
# Kernel 1: depthwise conv fused with global average pooling (ConvLayer1 +
# the AdaptiveAvgPool2d of WinKernel_Reweight).
# ---------------------------------------------------------------------------
def _make_dwconv_gap_kernel(H, W, roll_like_jnp):
    def kernel(x_ref, w_ref, o_ref):
        # x_ref: (1, H*W, Cblk), w_ref: (K, K, Cblk), o_ref: (1, 1, Cblk)
        y = _dw_taps(x_ref[0], w_ref[...], H, W, roll_like_jnp)
        o_ref[0] = (jnp.sum(y, axis=0, keepdims=True) *
                    (1.0 / (H * W))).astype(o_ref.dtype)
    return kernel


def dwconv_gap(x, w, H, W):
    """x: (B, H*W, C) channel-last; w: (K, K, C).  Returns (B, 1, C): the
    spatial mean of the depthwise conv output (all KernelAttention consumes)."""
    B, L, C = x.shape
    K = w.shape[0]
    assert L == H * W and w.shape[-1] == C
    cblk = min(C, 128)                     # lane-dense channel blocks
    grid = (B, pl.cdiv(C, cblk))
    return pl.pallas_call(
        _make_dwconv_gap_kernel(H, W, _roll_matches_jnp()),
        out_shape=jax.ShapeDtypeStruct((B, 1, C), x.dtype),
        grid=grid,
        in_specs=[
            pl.BlockSpec((1, L, cblk), lambda b, c: (b, 0, c)),
            pl.BlockSpec((K, K, cblk), lambda b, c: (0, 0, c)),
        ],
        out_specs=pl.BlockSpec((1, 1, cblk), lambda b, c: (b, 0, c)),
        compiler_params=pltpu.CompilerParams(
            dimension_semantics=("parallel", "parallel")),
    )(x, w)


# ---------------------------------------------------------------------------
# Kernel 2: per-branch depthwise conv + 1x1 fusion conv, fused.
# ---------------------------------------------------------------------------
def _make_dwconv_fuse_kernel(H, W, roll_like_jnp):
    def kernel(x_ref, w_ref, wf_ref, bf_ref, o_ref, acc_ref):
        # x_ref : (1, H*W, C)     features (same block reused for every branch)
        # w_ref : (1, K, K, C)    depthwise taps for this (batch, branch)
        # wf_ref: (1, C, Cout)    1x1 fusion weights for this branch
        # bf_ref: (1, Cout)       fusion bias
        # o_ref : (1, H*W, Cout)  written on the last branch
        # acc_ref: (H*W, Cout) f32 VMEM accumulator
        r = pl.program_id(1)

        @pl.when(r == 0)
        def _init():
            acc_ref[...] = jnp.zeros_like(acc_ref)

        y = _dw_taps(x_ref[0], w_ref[0], H, W, roll_like_jnp)       # (L, C) f32
        acc_ref[...] += jnp.dot(y, wf_ref[0].astype(jnp.float32),
                                preferred_element_type=jnp.float32)

        @pl.when(r == pl.num_programs(1) - 1)
        def _finalize():
            o_ref[0] = (acc_ref[...] +
                        bf_ref[...].astype(jnp.float32)).astype(o_ref.dtype)
    return kernel


def dwconv_branches_fuse(x, w_dw, w_fuse, b_fuse, H, W):
    """out[b] = sum_r dwconv(x[b], w_dw[b*G+r]) @ w_fuse[r] + b_fuse.

    x      : (B, H*W, C)
    w_dw   : (B*G, K, K, C)  per-(batch, branch, channel) depthwise taps
    w_fuse : (G, C, Cout)    1x1 fusion weights (branch-major input channels)
    b_fuse : (1, Cout)
    Returns (B, H*W, Cout).
    """
    B, L, C = x.shape
    G = w_dw.shape[0] // B
    K = w_dw.shape[1]
    Cout = w_fuse.shape[-1]
    assert L == H * W and w_dw.shape == (B * G, K, K, C)
    assert w_fuse.shape == (G, C, Cout) and b_fuse.shape == (1, Cout)
    # TODO(synk): for resolutions where a full (H*W, C) f32 tile no longer fits
    # VMEM (v7x: 64 MiB physical), add an H-tiled variant with a K//2-row halo.
    return pl.pallas_call(
        _make_dwconv_fuse_kernel(H, W, _roll_matches_jnp()),
        out_shape=jax.ShapeDtypeStruct((B, L, Cout), x.dtype),
        grid=(B, G),                               # branch axis = reduction
        in_specs=[
            pl.BlockSpec((1, L, C), lambda b, r: (b, 0, 0)),          # reused over r
            pl.BlockSpec((1, K, K, C), lambda b, r: (b * G + r, 0, 0, 0)),
            pl.BlockSpec((1, C, Cout), lambda b, r: (r, 0, 0)),
            pl.BlockSpec((1, Cout), lambda b, r: (0, 0)),
        ],
        out_specs=pl.BlockSpec((1, L, Cout), lambda b, r: (b, 0, 0)),
        scratch_shapes=[pltpu.VMEM((L, Cout), jnp.float32)],
        compiler_params=pltpu.CompilerParams(
            dimension_semantics=("parallel", "arbitrary")),
    )(x, w_dw, w_fuse, b_fuse)


# ---------------------------------------------------------------------------
# KernelAttention module
# ---------------------------------------------------------------------------
class KernelAttention:
    """JAX/Pallas port of the PSRT KernelAttention forward pass."""

    def __init__(self, dim, input_resolution, num_heads, ka_win_num=4,
                 kernel_size=7, stride=1, padding=3, qkv_bias=True,
                 qk_scale=None, attn_drop=0.0, proj_drop=0.0, key=None):
        del num_heads, qkv_bias, qk_scale, attn_drop, proj_drop   # unused in fwd
        assert stride == 1 and padding == kernel_size // 2
        self.dim = dim
        self.input_resolution = input_resolution
        self.win_num = ka_win_num
        self.kernel_size = kernel_size
        self.window_size = int(input_resolution // math.sqrt(ka_win_num))
        assert self.window_size * int(math.sqrt(ka_win_num)) == input_resolution
        if key is None:
            key = jax.random.PRNGKey(42)
        self.params = self._init_params(key)

    def _init_params(self, key):
        dim, win_num, K = self.dim, self.win_num, self.kernel_size
        G = win_num + 1
        ks = jax.random.split(key, 11)

        def u(k, shape, fan_in):
            b = 1.0 / math.sqrt(fan_in)
            return jax.random.uniform(k, shape, jnp.float32, -b, b)

        return {
            # ConvLayer1 parameter (torch.randn(win_num*dim, 1, K, K))
            "conv1_w": jax.random.normal(ks[0], (win_num * dim, 1, K, K),
                                         jnp.float32),
            # WinKernel_Reweight
            "dc_w": u(ks[1], (win_num, dim, 1, 1), dim),
            "dc_b": u(ks[2], (win_num,), dim),
            "l1_w": u(ks[3], (4 * win_num, win_num, 1, 1), win_num),
            "l1_b": u(ks[4], (4 * win_num,), win_num),
            "l2_w": u(ks[5], (win_num, 4 * win_num, 1, 1), 4 * win_num),
            "l2_b": u(ks[6], (win_num,), 4 * win_num),
            # gk_generation
            "gk_w": u(ks[7], (1, win_num, 1, 1), win_num),
            "gk_b": u(ks[8], (1,), win_num),
            # fusion
            "fu_w": u(ks[9], (dim, G * dim, 1, 1), G * dim),
            "fu_b": u(ks[10], (dim,), G * dim),
        }

    def __call__(self, x):
        p = self.params
        B, L, C = x.shape
        H = W = self.input_resolution
        ws = self.window_size
        win_num = self.win_num
        K = self.kernel_size
        G = win_num + 1
        nh, nw = H // ws, W // ws
        assert L == H * W and C == self.dim and nh * nw == win_num
        hp = lax.Precision.HIGHEST

        # ka_window_partition, kept channel-last: (B, ws*ws, win_num*C) with the
        # lane axis ordered (window, channel) exactly like PyTorch's
        # (B, win_num*C, ws, ws).  This is the only HBM transpose in the path.
        xw = x.reshape(B, nh, ws, nw, ws, C)
        xw = jnp.transpose(xw, (0, 2, 4, 1, 3, 5)).reshape(B, ws * ws,
                                                           win_num * C)

        # ConvLayer1 (depthwise KxK) fused with global average pooling.
        w1 = jnp.transpose(p["conv1_w"][:, 0], (1, 2, 0))   # (K, K, win_num*C)
        pooled = dwconv_gap(xw, w1, ws, ws).reshape(B, win_num, C)

        # WinKernel_Reweight squeeze/excite MLP (tiny -> plain JAX).
        dc = jnp.einsum("bwd,wd->bw", pooled, p["dc_w"][:, :, 0, 0],
                        precision=hp) + p["dc_b"]
        h1 = jax.nn.gelu(jnp.einsum("bw,jw->bj", dc, p["l1_w"][:, :, 0, 0],
                                    precision=hp) + p["l1_b"],
                         approximate=False)
        s = jax.nn.sigmoid(jnp.einsum("bj,wj->bw", h1, p["l2_w"][:, :, 0, 0],
                                      precision=hp) + p["l2_b"])

        # Re-weighted per-window kernels + global kernel (gk_generation).
        k0 = p["conv1_w"].reshape(win_num, C, K, K)
        sk = s[:, :, None, None, None] * k0[None]            # (B, win, C, K, K)
        gk = jnp.einsum("bwcij,w->bcij", sk, p["gk_w"][0, :, 0, 0],
                        precision=hp) + p["gk_b"][0]
        k_all = jnp.concatenate([sk, gk[:, None]], axis=1)   # (B, G, C, K, K)
        w_dw = jnp.transpose(k_all, (0, 1, 3, 4, 2)).reshape(B * G, K, K, C)

        # Fusion weights regrouped per branch: wf[r, d, o] = Wf[o, r*C + d].
        w_fuse = jnp.transpose(p["fu_w"][:, :, 0, 0].reshape(C, G, C),
                               (1, 2, 0))
        b_fuse = p["fu_b"].reshape(1, C)

        # ConvLayer2 + fusion, fused.  x is consumed directly as (B, L, C):
        # no repeat, no NCHW permute, no pad, no batch-1 reshape in HBM.
        return dwconv_branches_fuse(x, w_dw, w_fuse, b_fuse, H, W)


# ---------------------------------------------------------------------------
# Pure-JAX reference (mirrors the PyTorch forward op-by-op with lax.conv).
# ---------------------------------------------------------------------------
def reference_forward(x, p, *, dim, input_resolution, win_num, kernel_size):
    B, L, C = x.shape
    H = W = input_resolution
    ws = int(input_resolution // math.sqrt(win_num))
    K = kernel_size
    pad = K // 2
    G = win_num + 1
    hp = lax.Precision.HIGHEST

    def conv(lhs, rhs, padding, groups):
        return lax.conv_general_dilated(
            lhs, rhs, (1, 1), [(padding, padding)] * 2,
            dimension_numbers=("NCHW", "OIHW", "NCHW"),
            feature_group_count=groups, precision=hp)

    # ka_window_partition
    xw = x.reshape(B, H // ws, ws, W // ws, ws, C)
    xw = jnp.transpose(xw, (0, 1, 3, 5, 2, 4)).reshape(B, win_num * C, ws, ws)
    # convlayer1 (depthwise, no bias)
    w1out = conv(xw, p["conv1_w"], pad, win_num * C)
    # WinKernel_Reweight
    ww = jnp.mean(w1out, axis=(2, 3), keepdims=True)
    ww = conv(ww, p["dc_w"], 0, win_num) + p["dc_b"].reshape(1, -1, 1, 1)
    ww = conv(ww, p["l1_w"], 0, 1) + p["l1_b"].reshape(1, -1, 1, 1)
    ww = jnp.transpose(ww, (0, 2, 3, 1)).reshape(B, 1, -1)
    ww = jax.nn.gelu(ww, approximate=False)
    ww = jnp.swapaxes(ww, 1, 2).reshape(B, -1, 1, 1)
    ww = conv(ww, p["l2_w"], 0, 1) + p["l2_b"].reshape(1, -1, 1, 1)
    weight = jax.nn.sigmoid(ww)[..., None, None]
    kernels = p["conv1_w"].reshape(win_num, dim, 1, K, K)[None]
    kernels = jnp.broadcast_to(kernels, (B, win_num, dim, 1, K, K))
    kernels = (weight * kernels).reshape(-1, 1, K, K)
    # KernelAttention kernel plumbing
    kernels = kernels.reshape(B, win_num, dim, 1, K, K)
    kernels = jnp.swapaxes(kernels, 1, 2).reshape(B * dim, win_num, K, K)
    gk = conv(kernels, p["gk_w"], 0, 1) + p["gk_b"].reshape(1, -1, 1, 1)
    gk = gk.reshape(B, dim, 1, K, K)[:, None]
    kernels = kernels.reshape(B, dim, win_num, 1, K, K)
    kernels = jnp.swapaxes(kernels, 1, 2)
    kernels = jnp.concatenate([kernels, gk], axis=1).reshape(-1, 1, K, K)
    xi = jnp.transpose(x.reshape(B, H, W, C), (0, 3, 1, 2))
    xi = jnp.tile(xi, (1, G, 1, 1)).reshape(1, -1, H, W)
    x2 = conv(xi, kernels, pad, B * G * C).reshape(B, G * C, H, W)
    out = conv(x2, p["fu_w"], 0, 1) + p["fu_b"].reshape(1, -1, 1, 1)
    return jnp.transpose(out, (0, 2, 3, 1)).reshape(B, H * W, C)


# ---------------------------------------------------------------------------
if __name__ == "__main__":
    key = jax.random.PRNGKey(0)
    kx, kp = jax.random.split(key)

    B = 2
    dim = 128                # channels C (lane-dense: exactly one 128 block)
    input_resolution = 16    # H = W = 16  ->  window_size = 8
    win_num = 4
    kernel_size = 7
    L = input_resolution * input_resolution

    x = jax.random.normal(kx, (B, L, dim), jnp.float32)

    model = KernelAttention(dim, input_resolution, num_heads=4,
                            ka_win_num=win_num, kernel_size=kernel_size,
                            stride=1, padding=kernel_size // 2, key=kp)

    out = jax.block_until_ready(model(x))
    assert out.shape == (B, L, dim)

    ref = reference_forward(x, model.params, dim=dim,
                            input_resolution=input_resolution,
                            win_num=win_num, kernel_size=kernel_size)
    rel_err = float(jnp.linalg.norm(out - ref) / jnp.linalg.norm(ref))
    assert rel_err < 1e-2, f"relative error too large: {rel_err}"

    print("KERNEL_OK")
</pallas_src>

<mosaic_0001>
module attributes {stable_mosaic.version = 11 : i64} {
  func.func @kernel(%arg0: memref<8x128xf32, #tpu.memory_space<vmem>>, %arg1: memref<8x128xf32, #tpu.memory_space<vmem>>) attributes {dimension_semantics = [], scalar_prefetch = 0 : i64, scratch_operands = 0 : i64, tpu.core_type = #tpu.core_type<tc>} {
    %c0 = arith.constant 0 : index
    %c0_0 = arith.constant 0 : index
    %0 = vector.load %arg0[%c0, %c0_0] : memref<8x128xf32, #tpu.memory_space<vmem>>, vector<8x128xf32>
    %c1_i32 = arith.constant 1 : i32
    %1 = tpu.dynamic_rotate %0 by %c1_i32 dim 0 : vector<8x128xf32>, i32 -> vector<8x128xf32>
    %c0_1 = arith.constant 0 : index
    %c0_2 = arith.constant 0 : index
    %2 = vector.load %arg1[%c0_1, %c0_2] : memref<8x128xf32, #tpu.memory_space<vmem>>, vector<8x128xf32>
    tpu.vector_store %arg1[%c0_1, %c0_2], %1 {strides = array<i32>} : memref<8x128xf32, #tpu.memory_space<vmem>>, vector<8x128xf32>,
    return
  }
}

</mosaic_0001>

<llo_original>
// kernel: tpu_custom_call.1
$region0: #{tpu_custom_call.1}
  #allocation0 [shape = 'u32[]', space=smem, size = 0x4, offset = 0x4, fixed_abs, tag = 'smem constant byte address 0x4 - core index']
  #allocation1 [shape = 'u32[144,128]{1,0:T(1,128)}', space=vmem, size = 0x12000, scoped, tag = 'internal scratch']
  %s0 = inlined_call_operand.hbm [shape: f32[8,128], index: 0, kind: input, shape index: {}]
  %s1 = inlined_call_operand.hbm [shape: f32[8,128], index: 1, kind: output, shape index: {}]
  %s2 = sld [smem:[#allocation0]]
  $region18: #{tpu_custom_call.1} parent=0
    _
  %s4 = ssub.s32 1, %s2
  %s5 = scalar_select 0, %s4, %s2
  $region1: #{tpu_custom_call.1} parent=0
    #allocation2 [shape = 'u8[4096]{0}', space=vmem, size = 0x1000, scoped, tag = 'input window, operand 0, single buffered']
    #allocation3 [shape = 's32[1]{0}', space=sflag, size = 0x4, scoped, tag = 'scoped memory for tpu_custom_call.1']
    #allocation4 [shape = 's32[1]{0}', space=sflag, size = 0x4, scoped, tag = 'scoped memory for tpu_custom_call.1']
    #allocation5 [shape = 'u8[4096]{0}', space=vmem, size = 0x1000, scoped, tag = 'output window, operand 0, single buffered']
    %6 = vsyncpa [#allocation3], 0
    %7 = vsyncpa [#allocation4], 0
    // Predicated region
    $region2: #{tpu_custom_call.1} parent=1 // pred_check
      _
    $region3: #{tpu_custom_call.1} parent=1 // pred_check_branch
      %9 = sbr.rel (0) target = $region5
    $region4: #{tpu_custom_call.1} parent=1 // pred_region
      %s11 = ssub.s32 128, 128
      %12 = vsyncadd [#allocation3], %s11
      %s14 = sshll.u32 [#allocation2], 4
      %s15 = int_to_ptr.vmem [resolvable:$true] %s14
      %17 = dma.hbm_to_vmem [thread:$0]  %s0, 128, %s15, [#allocation3]
    $region5: #{tpu_custom_call.1} parent=1 // pred_fallthru
      _
    // Predicated region
    $region6: #{tpu_custom_call.1} parent=1 // pred_check
      _
    $region7: #{tpu_custom_call.1} parent=1 // pred_check_branch
      %19 = sbr.rel (0) target = $region9
    $region8: #{tpu_custom_call.1} parent=1 // pred_region
      %20 = dma.done [#allocation3], 128
    $region9: #{tpu_custom_call.1} parent=1 // pred_fallthru
      _
    %v21 = vld [vmem:[#allocation2] sm:$0xff]
    %v22 = vrot.slane %v21, 7
    %23 = vst [vmem:[#allocation5] sm:$0xff] %v22
    // Predicated region
    $region10: #{tpu_custom_call.1} parent=1 // pred_check
      _
    $region11: #{tpu_custom_call.1} parent=1 // pred_check_branch
      %25 = sbr.rel (0) target = $region13
    $region12: #{tpu_custom_call.1} parent=1 // pred_region
      %s27 = ssub.s32 128, 128
      %28 = vsyncadd [#allocation4], %s27
      %s30 = sshll.u32 [#allocation5], 4
      %s31 = int_to_ptr.vmem [resolvable:$true] %s30
      %33 = dma.vmem_to_hbm [thread:$0]  %s31, 128, %s1, [#allocation4]
    $region13: #{tpu_custom_call.1} parent=1 // pred_fallthru
      _
    // Predicated region
    $region14: #{tpu_custom_call.1} parent=1 // pred_check
      _
    $region15: #{tpu_custom_call.1} parent=1 // pred_check_branch
      %35 = sbr.rel (0) target = $region17
    $region16: #{tpu_custom_call.1} parent=1 // pred_region
      %36 = dma.done [#allocation4], 128
    $region17: #{tpu_custom_call.1} parent=1 // pred_fallthru
      _
    %37 = vsyncpa [#allocation3], 1
    %38 = vsyncpa [#allocation4], 1

</llo_original>
